<compile_context>
chip_gen: v6e
topology: v6e:2x2x1
jax: 0.10.0
libtpu: 0.0.40
codegen_flags: <defaults>
</compile_context>

<pallas_src>
import jax
import jax.numpy as jnp
from jax import lax
from jax.experimental import pallas as pl
from jax.experimental.pallas import tpu as pltpu


def _make_kernel(joint_idxs, data_weight, depth_loss_weight, has_depth):
    """Build the kernel with indices / weights baked in as trace-time constants."""
    data_w_sq = float(data_weight) ** 2
    depth_w_sq = float(depth_loss_weight) ** 2
    joint_idxs = tuple(int(i) for i in joint_idxs)

    def _joint_term(gt_ref, pred_ref):
        # gt_ref / pred_ref: VMEM (B, J*3) float32
        diff = gt_ref[...] - pred_ref[...]
        sq = diff * diff
        # Static joint-selection mask (replaces torch.index_select / jnp.take).
        # Column c belongs to joint c // 3; select columns [3*idx, 3*idx + 3).
        col = lax.broadcasted_iota(jnp.int32, sq.shape, 1)

        def col_mask(idx):
            return jnp.logical_and(col >= 3 * idx, col < 3 * idx + 3)

        mask = col_mask(joint_idxs[0])
        for idx in joint_idxs[1:]:
            mask = jnp.logical_or(mask, col_mask(idx))
        return jnp.sum(jnp.where(mask, sq, 0.0)) * data_w_sq

    if has_depth:
        def kernel(gt_ref, pred_ref, cam_ref, trans_ref, out_ref):
            joint_loss = _joint_term(gt_ref, pred_ref)
            dz = cam_ref[:, 2:3] - trans_ref[:, 2:3]          # static z-column slice
            out_ref[0, 0] = joint_loss + depth_w_sq * jnp.sum(dz * dz)
    else:
        def kernel(gt_ref, pred_ref, out_ref):
            out_ref[0, 0] = _joint_term(gt_ref, pred_ref)

    return kernel


def smplify_camera_init_loss(
    gt_joints3d,            # (B, J, 3) float32
    model_joints,           # (B, J, 3) float32
    camera_translation,     # (B, 3)    float32
    init_joints_idxs,       # (K,)      int-like, treated as STATIC (module buffer)
    trans_estimation=None,  # (B, 3)    float32 or None
    data_weight=1.0,
    depth_loss_weight=100.0,
):
    B, J, _ = gt_joints3d.shape

    # Free reshape (contiguous) -> (B, J*3) lane axis; no gather, no HBM copy.
    gt_flat = gt_joints3d.reshape(B, J * 3).astype(jnp.float32)
    pred_flat = model_joints.reshape(B, J * 3).astype(jnp.float32)

    # Compile-time gate, matching PyTorch's `.item() > 0 and trans_estimation is not None`.
    has_depth = (trans_estimation is not None) and (float(depth_loss_weight) > 0.0)

    kernel = _make_kernel(init_joints_idxs, data_weight, depth_loss_weight, has_depth)

    vmem_spec = pl.BlockSpec(memory_space=pltpu.MemorySpace.VMEM)
    if has_depth:
        inputs = (
            gt_flat,
            pred_flat,
            camera_translation.astype(jnp.float32),
            trans_estimation.astype(jnp.float32),
        )
    else:
        inputs = (gt_flat, pred_flat)
    in_specs = [vmem_spec] * len(inputs)

    # Advisory cost hint: tiny flops/bytes, keeps XLA from serializing around us.
    flops = 4 * B * J * 3 + (4 * B if has_depth else 0)
    bytes_accessed = sum(int(x.size) * x.dtype.itemsize for x in inputs) + 4

    out = pl.pallas_call(
        kernel,
        out_shape=jax.ShapeDtypeStruct((1, 1), jnp.float32),
        in_specs=in_specs,
        out_specs=pl.BlockSpec(memory_space=pltpu.MemorySpace.SMEM),
        cost_estimate=pl.CostEstimate(
            flops=flops, transcendentals=0, bytes_accessed=bytes_accessed
        ),
    )(*inputs)

    return out[0, 0]


def _reference(gt, pred, cam_t, idxs, trans_est, data_w, depth_w):
    gt_s = jnp.take(gt, idxs, axis=1)
    pr_s = jnp.take(pred, idxs, axis=1)
    joint_loss = jnp.sum((gt_s - pr_s) ** 2) * data_w ** 2
    depth_loss = 0.0
    if depth_w > 0 and trans_est is not None:
        depth_loss = depth_w ** 2 * jnp.sum((cam_t[:, 2] - trans_est[:, 2]) ** 2)
    return joint_loss + depth_loss


if __name__ == "__main__":
    key = jax.random.PRNGKey(0)
    k1, k2, k3, k4 = jax.random.split(key, 4)

    B, J = 2, 12                                                        # batch, joints
    init_joints_idxs = jnp.array([0, 2, 5, 7, 9, 11], dtype=jnp.int32)  # K = 6

    gt_joints3d = jax.random.normal(k1, (B, J, 3), dtype=jnp.float32)
    model_joints = jax.random.normal(k2, (B, J, 3), dtype=jnp.float32)
    camera_translation = jax.random.normal(k3, (B, 3), dtype=jnp.float32)
    trans_estimation = jax.random.normal(k4, (B, 3), dtype=jnp.float32)

    data_weight = 1.0
    depth_loss_weight = 100.0

    # With depth term.
    loss = smplify_camera_init_loss(
        gt_joints3d,
        model_joints,
        camera_translation,
        init_joints_idxs,
        trans_estimation=trans_estimation,
        data_weight=data_weight,
        depth_loss_weight=depth_loss_weight,
    )
    loss = jax.block_until_ready(loss)
    ref = _reference(
        gt_joints3d, model_joints, camera_translation,
        init_joints_idxs, trans_estimation, data_weight, depth_loss_weight,
    )
    assert jnp.allclose(loss, ref, rtol=1e-5, atol=1e-5), (loss, ref)

    # Without depth term (trans_estimation=None path).
    loss_nd = smplify_camera_init_loss(
        gt_joints3d,
        model_joints,
        camera_translation,
        init_joints_idxs,
        trans_estimation=None,
        data_weight=data_weight,
        depth_loss_weight=depth_loss_weight,
    )
    loss_nd = jax.block_until_ready(loss_nd)
    ref_nd = _reference(
        gt_joints3d, model_joints, camera_translation,
        init_joints_idxs, None, data_weight, depth_loss_weight,
    )
    assert jnp.allclose(loss_nd, ref_nd, rtol=1e-5, atol=1e-5), (loss_nd, ref_nd)

    print("KERNEL_OK")
</pallas_src>

<mosaic_0001>
module attributes {stable_mosaic.version = 11 : i64} {
  func.func @kernel(%arg0: memref<2x36xf32, #tpu.memory_space<vmem>>, %arg1: memref<2x36xf32, #tpu.memory_space<vmem>>, %arg2: memref<2x3xf32, #tpu.memory_space<vmem>>, %arg3: memref<2x3xf32, #tpu.memory_space<vmem>>, %arg4: memref<1x1xf32, #tpu.memory_space<smem>>) attributes {dimension_semantics = [], scalar_prefetch = 0 : i64, scratch_operands = 0 : i64, tpu.core_type = #tpu.core_type<tc>} {
    %c0 = arith.constant 0 : index
    %c0_0 = arith.constant 0 : index
    %0 = vector.load %arg0[%c0, %c0_0] : memref<2x36xf32, #tpu.memory_space<vmem>>, vector<2x36xf32>
    %c0_1 = arith.constant 0 : index
    %c0_2 = arith.constant 0 : index
    %1 = vector.load %arg1[%c0_1, %c0_2] : memref<2x36xf32, #tpu.memory_space<vmem>>, vector<2x36xf32>
    %2 = arith.subf %0, %1 : vector<2x36xf32>
    %3 = arith.mulf %2, %2 : vector<2x36xf32>
    %4 = tpu.iota {dimensions = array<i32: 1>} : vector<2x36xi32>
    %c0_i32 = arith.constant 0 : i32
    %5 = vector.broadcast %c0_i32 : i32 to vector<2x36xi32>
    %6 = arith.cmpi sge, %4, %5 : vector<2x36xi32>
    %c3_i32 = arith.constant 3 : i32
    %7 = vector.broadcast %c3_i32 : i32 to vector<2x36xi32>
    %8 = arith.cmpi slt, %4, %7 : vector<2x36xi32>
    %9 = arith.andi %6, %8 : vector<2x36xi1>
    %c6_i32 = arith.constant 6 : i32
    %10 = vector.broadcast %c6_i32 : i32 to vector<2x36xi32>
    %11 = arith.cmpi sge, %4, %10 : vector<2x36xi32>
    %c9_i32 = arith.constant 9 : i32
    %12 = vector.broadcast %c9_i32 : i32 to vector<2x36xi32>
    %13 = arith.cmpi slt, %4, %12 : vector<2x36xi32>
    %14 = arith.andi %11, %13 : vector<2x36xi1>
    %15 = arith.ori %9, %14 : vector<2x36xi1>
    %c15_i32 = arith.constant 15 : i32
    %16 = vector.broadcast %c15_i32 : i32 to vector<2x36xi32>
    %17 = arith.cmpi sge, %4, %16 : vector<2x36xi32>
    %c18_i32 = arith.constant 18 : i32
    %18 = vector.broadcast %c18_i32 : i32 to vector<2x36xi32>
    %19 = arith.cmpi slt, %4, %18 : vector<2x36xi32>
    %20 = arith.andi %17, %19 : vector<2x36xi1>
    %21 = arith.ori %15, %20 : vector<2x36xi1>
    %c21_i32 = arith.constant 21 : i32
    %22 = vector.broadcast %c21_i32 : i32 to vector<2x36xi32>
    %23 = arith.cmpi sge, %4, %22 : vector<2x36xi32>
    %c24_i32 = arith.constant 24 : i32
    %24 = vector.broadcast %c24_i32 : i32 to vector<2x36xi32>
    %25 = arith.cmpi slt, %4, %24 : vector<2x36xi32>
    %26 = arith.andi %23, %25 : vector<2x36xi1>
    %27 = arith.ori %21, %26 : vector<2x36xi1>
    %c27_i32 = arith.constant 27 : i32
    %28 = vector.broadcast %c27_i32 : i32 to vector<2x36xi32>
    %29 = arith.cmpi sge, %4, %28 : vector<2x36xi32>
    %c30_i32 = arith.constant 30 : i32
    %30 = vector.broadcast %c30_i32 : i32 to vector<2x36xi32>
    %31 = arith.cmpi slt, %4, %30 : vector<2x36xi32>
    %32 = arith.andi %29, %31 : vector<2x36xi1>
    %33 = arith.ori %27, %32 : vector<2x36xi1>
    %c33_i32 = arith.constant 33 : i32
    %34 = vector.broadcast %c33_i32 : i32 to vector<2x36xi32>
    %35 = arith.cmpi sge, %4, %34 : vector<2x36xi32>
    %c36_i32 = arith.constant 36 : i32
    %36 = vector.broadcast %c36_i32 : i32 to vector<2x36xi32>
    %37 = arith.cmpi slt, %4, %36 : vector<2x36xi32>
    %38 = arith.andi %35, %37 : vector<2x36xi1>
    %39 = arith.ori %33, %38 : vector<2x36xi1>
    %cst = arith.constant 0.000000e+00 : f32
    %40 = vector.broadcast %cst : f32 to vector<2x36xf32>
    %41 = arith.select %39, %3, %40 : vector<2x36xi1>, vector<2x36xf32>
    %42 = vector.shape_cast %41 : vector<2x36xf32> to vector<1x2x36xf32>
    %cst_3 = arith.constant dense<0.000000e+00> : vector<1xf32>
    %43 = vector.multi_reduction <add>, %42, %cst_3 [1, 2] : vector<1x2x36xf32> to vector<1xf32>
    %44 = vector.shape_cast %43 : vector<1xf32> to vector<1x1x1xf32>
    %45 = vector.extract %44[0, 0, 0] : f32 from vector<1x1x1xf32>
    %cst_4 = arith.constant 1.000000e+00 : f32
    %46 = arith.mulf %45, %cst_4 : f32
    %c0_5 = arith.constant 0 : index
    %c2 = arith.constant 2 : index
    %47 = vector.load %arg2[%c0_5, %c2] : memref<2x3xf32, #tpu.memory_space<vmem>>, vector<2x1xf32>
    %c0_6 = arith.constant 0 : index
    %c2_7 = arith.constant 2 : index
    %48 = vector.load %arg3[%c0_6, %c2_7] : memref<2x3xf32, #tpu.memory_space<vmem>>, vector<2x1xf32>
    %49 = arith.subf %47, %48 : vector<2x1xf32>
    %50 = arith.mulf %49, %49 : vector<2x1xf32>
    %51 = vector.shape_cast %50 : vector<2x1xf32> to vector<1x2x1xf32>
    %cst_8 = arith.constant dense<0.000000e+00> : vector<1xf32>
    %52 = vector.multi_reduction <add>, %51, %cst_8 [1, 2] : vector<1x2x1xf32> to vector<1xf32>
    %53 = vector.shape_cast %52 : vector<1xf32> to vector<1x1x1xf32>
    %54 = vector.extract %53[0, 0, 0] : f32 from vector<1x1x1xf32>
    %cst_9 = arith.constant 1.000000e+04 : f32
    %55 = arith.mulf %cst_9, %54 : f32
    %56 = arith.addf %46, %55 : f32
    %c0_10 = arith.constant 0 : index
    %c0_11 = arith.constant 0 : index
    %57 = memref.load %arg4[%c0_10, %c0_11] : memref<1x1xf32, #tpu.memory_space<smem>>
    memref.store %56, %arg4[%c0_10, %c0_11] : memref<1x1xf32, #tpu.memory_space<smem>>
    return
  }
}

</mosaic_0001>

<llo_original>
// kernel: tpu_custom_call.1
$region0: #{tpu_custom_call.1}
  #allocation0 [shape = 'u32[]', space=smem, size = 0x4, offset = 0x4, fixed_abs, tag = 'smem constant byte address 0x4 - core index']
  #allocation1 [shape = 'u32[144,128]{1,0:T(1,128)}', space=vmem, size = 0x12000, scoped, tag = 'internal scratch']
  %s0 = inlined_call_operand.hbm [shape: f32[2,36], index: 0, kind: input, shape index: {}]
  %s1 = inlined_call_operand.hbm [shape: f32[2,36], index: 1, kind: input, shape index: {}]
  %s2 = inlined_call_operand.vmem [shape: f32[2,3], index: 2, kind: input, shape index: {}]
  %s3 = inlined_call_operand.vmem [shape: f32[2,3], index: 3, kind: input, shape index: {}]
  %s4 = inlined_call_operand.hbm [shape: f32[1,1], index: 4, kind: output, shape index: {}]
  %s5 = sld [smem:[#allocation0]]
  $region34: #{tpu_custom_call.1} parent=0
    _
  %s7 = ssub.s32 1, %s5
  %s8 = scalar_select 0, %s7, %s5
  $region1: #{tpu_custom_call.1} parent=0
    #allocation2 [shape = 'u8[1024]{0}', space=vmem, size = 0x400, scoped, tag = 'input window, operand 0, single buffered']
    #allocation3 [shape = 's32[1]{0}', space=sflag, size = 0x4, scoped, tag = 'scoped memory for tpu_custom_call.1']
    #allocation4 [shape = 's32[1]{0}', space=sflag, size = 0x4, scoped, tag = 'scoped memory for tpu_custom_call.1']
    #allocation5 [shape = 'u8[1024]{0}', space=vmem, size = 0x400, scoped, tag = 'input window, operand 1, single buffered']
    #allocation6 [shape = 's32[1]{0}', space=sflag, size = 0x4, scoped, tag = 'scoped memory for tpu_custom_call.1']
    #allocation7 [shape = 'u8[512]{0}', space=smem, size = 0x200, scoped, tag = 'output window, operand 0, single buffered']
    %9 = vsyncpa [#allocation3], 0
    %10 = vsyncpa [#allocation6], 0
    %11 = vsyncpa [#allocation4], 0
    // Predicated region
    $region2: #{tpu_custom_call.1} parent=1 // pred_check
      _
    $region3: #{tpu_custom_call.1} parent=1 // pred_check_branch
      %13 = sbr.rel (0) target = $region5
    $region4: #{tpu_custom_call.1} parent=1 // pred_region
      %s15 = ssub.s32 32, 32
      %16 = vsyncadd [#allocation3], %s15
      %s18 = sshll.u32 [#allocation2], 4
      %s19 = int_to_ptr.vmem [resolvable:$true] %s18
      %21 = dma.hbm_to_vmem [thread:$0]  %s0, 32, %s19, [#allocation3]
    $region5: #{tpu_custom_call.1} parent=1 // pred_fallthru
      _
    // Predicated region
    $region6: #{tpu_custom_call.1} parent=1 // pred_check
      _
    $region7: #{tpu_custom_call.1} parent=1 // pred_check_branch
      %23 = sbr.rel (0) target = $region9
    $region8: #{tpu_custom_call.1} parent=1 // pred_region
      %s25 = ssub.s32 32, 32
      %26 = vsyncadd [#allocation6], %s25
      %s28 = sshll.u32 [#allocation5], 4
      %s29 = int_to_ptr.vmem [resolvable:$true] %s28
      %31 = dma.hbm_to_vmem [thread:$0]  %s1, 32, %s29, [#allocation6]
    $region9: #{tpu_custom_call.1} parent=1 // pred_fallthru
      _
    // Predicated region
    $region10: #{tpu_custom_call.1} parent=1 // pred_check
      _
    $region11: #{tpu_custom_call.1} parent=1 // pred_check_branch
      %33 = sbr.rel (0) target = $region13
    $region12: #{tpu_custom_call.1} parent=1 // pred_region
      _
    $region13: #{tpu_custom_call.1} parent=1 // pred_fallthru
      _
    // Predicated region
    $region14: #{tpu_custom_call.1} parent=1 // pred_check
      _
    $region15: #{tpu_custom_call.1} parent=1 // pred_check_branch
      %35 = sbr.rel (0) target = $region17
    $region16: #{tpu_custom_call.1} parent=1 // pred_region
      _
    $region17: #{tpu_custom_call.1} parent=1 // pred_fallthru
      _
    // Predicated region
    $region18: #{tpu_custom_call.1} parent=1 // pred_check
      _
    $region19: #{tpu_custom_call.1} parent=1 // pred_check_branch
      %37 = sbr.rel (0) target = $region21
    $region20: #{tpu_custom_call.1} parent=1 // pred_region
      %38 = dma.done [#allocation3], 32
    $region21: #{tpu_custom_call.1} parent=1 // pred_fallthru
      _
    // Predicated region
    $region22: #{tpu_custom_call.1} parent=1 // pred_check
      _
    $region23: #{tpu_custom_call.1} parent=1 // pred_check_branch
      %40 = sbr.rel (0) target = $region25
    $region24: #{tpu_custom_call.1} parent=1 // pred_region
      %41 = dma.done [#allocation6], 32
    $region25: #{tpu_custom_call.1} parent=1 // pred_fallthru
      _
    %v42 = vld [vmem:[#allocation2] sm:$0x3]
    %v43 = vld [vmem:[#allocation5] sm:$0x3]
    %v44 = vsub.f32 %v42, %v43
    %v45 = vmul.f32 %v44, %v44
    %v46 = vlaneseq
    %v47 = vand.u32 %v46, 127
    %vm48 = vcmp.ge.s32.totalorder %v47, 0
    %vm49 = vcmp.lt.s32.totalorder %v47, 3
    %vm50 = vmand %vm48, %vm49
    %vm51 = vcmp.ge.s32.totalorder %v47, 6
    %vm52 = vcmp.lt.s32.totalorder %v47, 9
    %vm53 = vmand %vm51, %vm52
    %vm54 = vmor %vm50, %vm53
    %vm55 = vcmp.ge.s32.totalorder %v47, 15
    %vm56 = vcmp.lt.s32.totalorder %v47, 18
    %vm57 = vmand %vm55, %vm56
    %vm58 = vmor %vm54, %vm57
    %vm59 = vcmp.ge.s32.totalorder %v47, 21
    %vm60 = vcmp.lt.s32.totalorder %v47, 24
    %vm61 = vmand %vm59, %vm60
    %vm62 = vmor %vm58, %vm61
    %vm63 = vcmp.ge.s32.totalorder %v47, 27
    %vm64 = vcmp.lt.s32.totalorder %v47, 30
    %vm65 = vmand %vm63, %vm64
    %vm66 = vmor %vm62, %vm65
    %vm67 = vcmp.ge.s32.totalorder %v47, 33
    %vm68 = vcmp.lt.s32.totalorder %v47, 36
    %vm69 = vmand %vm67, %vm68
    %vm70 = vmor %vm66, %vm69
    %v71 = vsel %vm70, %v45, 0.0
    %vm72 = vcmask 287744
    %v73 = vsel %vm72, %v71, 0.0
    %74 = vadd.xlane.f32.xlu0 %v73
    %v75 = vpop.xlane.xlu0 %74
    %v76 = vrot.slane %v75, 4
    %v77 = vadd.f32 %v75, %v76
    %v78 = vrot.slane %v77, 2
    %v79 = vadd.f32 %v77, %v78
    %v80 = vrot.slane %v79, 1
    %v81 = vadd.f32 %v79, %v80
    %s82 = vtos %v81
    %v83 = vld [vmem:[%s2] sm:$0x3]
    %v84 = vld [vmem:[%s3] sm:$0x3]
    %v85 = vsub.f32 %v83, %v84
    %v86 = vmul.f32 %v85, %v85
    %88 = vrot.lane.b32.xlu0 %v86, 126
    %v89 = vpop.permute.xlu0 %88
    %vm91 = vcmask 1024
    %v92 = vsel %vm91, %v89, 0.0
    %93 = vadd.xlane.f32.xlu0 %v92
    %v94 = vpop.xlane.xlu0 %93
    %v95 = vrot.slane %v94, 4
    %v96 = vadd.f32 %v94, %v95
    %v97 = vrot.slane %v96, 2
    %v98 = vadd.f32 %v96, %v97
    %v99 = vrot.slane %v98, 1
    %v100 = vadd.f32 %v98, %v99
    %s101 = vtos %v100
    %s102 = smul.f32 %s101, 10000.0
    %s103 = sadd.f32 %s82, %s102
    %s104 = scalar_lea.smem [#allocation7], 0
    %105 = sst [smem:[%s104]] %s103
    // Predicated region
    $region26: #{tpu_custom_call.1} parent=1 // pred_check
      _
    $region27: #{tpu_custom_call.1} parent=1 // pred_check_branch
      %107 = sbr.rel (0) target = $region29
    $region28: #{tpu_custom_call.1} parent=1 // pred_region
      %s109 = ssub.s32 16, 16
      %110 = vsyncadd [#allocation4], %s109
      %113 = dma.smem_to_hbm [#allocation7], 16, %s4, [#allocation4]
    $region29: #{tpu_custom_call.1} parent=1 // pred_fallthru
      _
    // Predicated region
    $region30: #{tpu_custom_call.1} parent=1 // pred_check
      _
    $region31: #{tpu_custom_call.1} parent=1 // pred_check_branch
      %115 = sbr.rel (0) target = $region33
    $region32: #{tpu_custom_call.1} parent=1 // pred_region
      %116 = dma.done [#allocation4], 16
    $region33: #{tpu_custom_call.1} parent=1 // pred_fallthru
      _
    %117 = sfence
    %118 = vsyncpa [#allocation3], 1
    %119 = vsyncpa [#allocation6], 1
    %120 = vsyncpa [#allocation4], 1

</llo_original>
